<compile_context>
chip_gen: v6e
topology: v6e:2x2x1
jax: 0.10.0
libtpu: 0.0.40
codegen_flags: <defaults>
</compile_context>

<pallas_src>
import functools

import jax
import jax.numpy as jnp
from jax.experimental import pallas as pl
from jax.experimental.pallas import tpu as pltpu


def _round_up(n, m):
    return ((n + m - 1) // m) * m


def _mlp_kernel(xT_ref, w1_ref, b1_ref, w2_ref, b2_ref, w3_ref, b3_ref, o_ref):
    """Fused 3-layer MLP forward for one batch tile (batch along lanes).

    xT_ref: (F, TB)     w1_ref: (H, F)   b1_ref: (H, 1)
    w2_ref: (H, H)      b2_ref: (H, 1)
    w3_ref: (H, 1)      b3_ref: (1, 1)   [SMEM scalar]
    o_ref:  (1, TB)
    """
    xT = xT_ref[...]

    # h1^T = ReLU(W1 @ x^T + b1)
    h1 = jnp.dot(w1_ref[...], xT, preferred_element_type=jnp.float32) + b1_ref[...]
    h1 = jnp.maximum(h1, 0.0)

    # h2^T = ReLU(W2 @ h1^T + b2)
    h2 = jnp.dot(w2_ref[...], h1, preferred_element_type=jnp.float32) + b2_ref[...]
    h2 = jnp.maximum(h2, 0.0)

    # Output layer (out_features == 1): VPU multiply + sublane reduce instead
    # of an N=1 MXU matmul; result is already a lane-dense (1, TB) row.
    logits = jnp.sum(w3_ref[...] * h2, axis=0, keepdims=True) + b3_ref[0, 0]
    o_ref[...] = jax.nn.sigmoid(logits)


@functools.partial(jax.jit, static_argnames=("tb",))
def simple_mlp_forward(x, params, tb=512):
    """Run the fused MLP kernel; returns sigmoid probabilities of shape (B, 1)."""
    w1, b1, w2, b2, w3, b3 = params
    B, F = x.shape
    H = w1.shape[0]

    # Single grid step for small batches; 512-wide lane tiles otherwise.
    tb_eff = min(tb, _round_up(B, 128))
    B_pad = _round_up(B, tb_eff)
    num_tiles = B_pad // tb_eff

    # Present the batch along the lane (last) dimension: transpose + pad.
    # (Wrapper-side transpose/pad is cheap layout plumbing.)
    xT = x.T
    if B_pad != B:
        xT = jnp.pad(xT, ((0, 0), (0, B_pad - B)))

    out_row = pl.pallas_call(
        _mlp_kernel,
        out_shape=jax.ShapeDtypeStruct((1, B_pad), jnp.float32),
        grid_spec=pltpu.PrefetchScalarGridSpec(
            num_scalar_prefetch=0,
            grid=(num_tiles,),
            in_specs=[
                pl.BlockSpec((F, tb_eff), lambda i: (0, i)),        # x^T tile
                pl.BlockSpec((H, F), lambda i: (0, 0)),             # W1 (resident)
                pl.BlockSpec((H, 1), lambda i: (0, 0)),             # b1
                pl.BlockSpec((H, H), lambda i: (0, 0)),             # W2
                pl.BlockSpec((H, 1), lambda i: (0, 0)),             # b2
                pl.BlockSpec((H, 1), lambda i: (0, 0)),             # w3 (column)
                pl.BlockSpec(memory_space=pltpu.MemorySpace.SMEM),  # b3 scalar
            ],
            out_specs=pl.BlockSpec((1, tb_eff), lambda i: (0, i)),  # lane-dense row
        ),
        compiler_params=pltpu.CompilerParams(
            dimension_semantics=("parallel",),
        ),
    )(xT, w1, b1, w2, b2, w3, b3)

    # Back to the PyTorch-style (B, 1) column.
    return out_row[0, :B].reshape(B, 1)


def init_params(key, n_features, n_hidden):
    """PyTorch nn.Linear default init: U[-1/sqrt(fan_in), 1/sqrt(fan_in)].

    Weights use the PyTorch-native [out, in] layout; biases are [out, 1]
    columns; the final-layer weight is stored as a column [n_hidden, 1].
    """
    k1, k2, k3, k4, k5, k6 = jax.random.split(key, 6)

    def uniform(k, shape, fan_in):
        bound = 1.0 / jnp.sqrt(jnp.float32(fan_in))
        return jax.random.uniform(k, shape, jnp.float32, -bound, bound)

    w1 = uniform(k1, (n_hidden, n_features), n_features)
    b1 = uniform(k2, (n_hidden, 1), n_features)
    w2 = uniform(k3, (n_hidden, n_hidden), n_hidden)
    b2 = uniform(k4, (n_hidden, 1), n_hidden)
    w3 = uniform(k5, (n_hidden, 1), n_hidden)
    b3 = uniform(k6, (1, 1), n_hidden)
    return (w1, b1, w2, b2, w3, b3)


def _reference_forward(x, params):
    """Plain-JAX reference matching the PyTorch forward."""
    w1, b1, w2, b2, w3, b3 = params
    h1 = jnp.maximum(x @ w1.T + b1.T, 0.0)
    h2 = jnp.maximum(h1 @ w2.T + b2.T, 0.0)
    return jax.nn.sigmoid(h2 @ w3 + b3)


if __name__ == "__main__":
    key = jax.random.PRNGKey(0)
    k_x, k_p = jax.random.split(key)

    batch, n_features, n_hidden = 8, 16, 32
    x = jax.random.normal(k_x, (batch, n_features), dtype=jnp.float32)
    params = init_params(k_p, n_features, n_hidden)

    out = simple_mlp_forward(x, params)
    out = jax.block_until_ready(out)

    ref = _reference_forward(x, params)
    assert out.shape == (batch, 1), out.shape
    assert jnp.allclose(out, ref, atol=1e-5, rtol=1e-4), "mismatch vs reference"

    print("KERNEL_OK")
</pallas_src>

<mosaic_0001>
module attributes {stable_mosaic.version = 11 : i64} {
  func.func @_mlp_kernel(%arg0: i32, %arg1: memref<16x128xf32, #tpu.memory_space<vmem>>, %arg2: memref<32x16xf32, #tpu.memory_space<vmem>>, %arg3: memref<32x1xf32, #tpu.memory_space<vmem>>, %arg4: memref<32x32xf32, #tpu.memory_space<vmem>>, %arg5: memref<32x1xf32, #tpu.memory_space<vmem>>, %arg6: memref<32x1xf32, #tpu.memory_space<vmem>>, %arg7: memref<1x1xf32, #tpu.memory_space<smem>>, %arg8: memref<1x128xf32, #tpu.memory_space<vmem>>) attributes {dimension_semantics = [#tpu.dimension_semantics<parallel>], iteration_bounds = array<i64: 1>, scalar_prefetch = 0 : i64, scratch_operands = 0 : i64, tpu.core_type = #tpu.core_type<tc>, window_params = [{transform_indices = @transform_0, window_bounds = array<i64: 16, 128>}, {pipeline_mode = #tpu.pipeline_mode<synchronous>, transform_indices = @transform_1, window_bounds = array<i64: 32, 16>}, {pipeline_mode = #tpu.pipeline_mode<synchronous>, transform_indices = @transform_2, window_bounds = array<i64: 32, 1>}, {pipeline_mode = #tpu.pipeline_mode<synchronous>, transform_indices = @transform_3, window_bounds = array<i64: 32, 32>}, {pipeline_mode = #tpu.pipeline_mode<synchronous>, transform_indices = @transform_4, window_bounds = array<i64: 32, 1>}, {pipeline_mode = #tpu.pipeline_mode<synchronous>, transform_indices = @transform_5, window_bounds = array<i64: 32, 1>}, {transform_indices = @transform_6, window_bounds = array<i64: 1, 1>}, {transform_indices = @transform_7, window_bounds = array<i64: 1, 128>}]} {
    %c0 = arith.constant 0 : index
    %c0_0 = arith.constant 0 : index
    %0 = vector.load %arg1[%c0, %c0_0] : memref<16x128xf32, #tpu.memory_space<vmem>>, vector<16x128xf32>
    %c0_1 = arith.constant 0 : index
    %c0_2 = arith.constant 0 : index
    %1 = vector.load %arg2[%c0_1, %c0_2] : memref<32x16xf32, #tpu.memory_space<vmem>>, vector<32x16xf32>
    %cst = arith.constant dense<0.000000e+00> : vector<32x128xf32>
    %2 = tpu.matmul %1, %0, %cst {dimension_numbers = #tpu.dot_dimension_numbers<[1], [0], [0], [1], [0, 0, 1, 1], [], []>} : vector<32x16xf32>, vector<16x128xf32>, vector<32x128xf32> -> vector<32x128xf32>
    %c0_3 = arith.constant 0 : index
    %c0_4 = arith.constant 0 : index
    %3 = vector.load %arg3[%c0_3, %c0_4] : memref<32x1xf32, #tpu.memory_space<vmem>>, vector<32x1xf32>
    %4 = vector.broadcast %3 : vector<32x1xf32> to vector<32x128xf32>
    %5 = arith.addf %2, %4 : vector<32x128xf32>
    %cst_5 = arith.constant 0.000000e+00 : f32
    %6 = vector.broadcast %cst_5 : f32 to vector<32x128xf32>
    %7 = arith.maximumf %5, %6 : vector<32x128xf32>
    %c0_6 = arith.constant 0 : index
    %c0_7 = arith.constant 0 : index
    %8 = vector.load %arg4[%c0_6, %c0_7] : memref<32x32xf32, #tpu.memory_space<vmem>>, vector<32x32xf32>
    %cst_8 = arith.constant dense<0.000000e+00> : vector<32x128xf32>
    %9 = tpu.matmul %8, %7, %cst_8 {dimension_numbers = #tpu.dot_dimension_numbers<[1], [0], [0], [1], [0, 0, 1, 1], [], []>} : vector<32x32xf32>, vector<32x128xf32>, vector<32x128xf32> -> vector<32x128xf32>
    %c0_9 = arith.constant 0 : index
    %c0_10 = arith.constant 0 : index
    %10 = vector.load %arg5[%c0_9, %c0_10] : memref<32x1xf32, #tpu.memory_space<vmem>>, vector<32x1xf32>
    %11 = vector.broadcast %10 : vector<32x1xf32> to vector<32x128xf32>
    %12 = arith.addf %9, %11 : vector<32x128xf32>
    %cst_11 = arith.constant 0.000000e+00 : f32
    %13 = vector.broadcast %cst_11 : f32 to vector<32x128xf32>
    %14 = arith.maximumf %12, %13 : vector<32x128xf32>
    %c0_12 = arith.constant 0 : index
    %c0_13 = arith.constant 0 : index
    %15 = vector.load %arg6[%c0_12, %c0_13] : memref<32x1xf32, #tpu.memory_space<vmem>>, vector<32x1xf32>
    %16 = vector.broadcast %15 : vector<32x1xf32> to vector<32x128xf32>
    %17 = arith.mulf %16, %14 : vector<32x128xf32>
    %cst_14 = arith.constant dense<0.000000e+00> : vector<128xf32>
    %18 = vector.multi_reduction <add>, %17, %cst_14 [0] : vector<32x128xf32> to vector<128xf32>
    %19 = vector.shape_cast %18 : vector<128xf32> to vector<1x128xf32>
    %c0_15 = arith.constant 0 : index
    %c0_16 = arith.constant 0 : index
    %20 = memref.load %arg7[%c0_15, %c0_16] : memref<1x1xf32, #tpu.memory_space<smem>>
    %21 = vector.broadcast %20 : f32 to vector<1x128xf32>
    %22 = arith.addf %19, %21 : vector<1x128xf32>
    %23 = arith.negf %22 : vector<1x128xf32>
    %24 = math.exp %23 : vector<1x128xf32>
    %cst_17 = arith.constant 1.000000e+00 : f32
    %25 = vector.broadcast %cst_17 : f32 to vector<1x128xf32>
    %26 = arith.addf %25, %24 : vector<1x128xf32>
    %27 = arith.divf %25, %26 : vector<1x128xf32>
    %c0_18 = arith.constant 0 : index
    %c0_19 = arith.constant 0 : index
    %28 = vector.load %arg8[%c0_18, %c0_19] : memref<1x128xf32, #tpu.memory_space<vmem>>, vector<1x128xf32>
    tpu.vector_store %arg8[%c0_18, %c0_19], %27 {strides = array<i32>} : memref<1x128xf32, #tpu.memory_space<vmem>>, vector<1x128xf32>,
    return
  }
  func.func @transform_0(%arg0: i32) -> (i32, i32) {
    %c0_i32 = arith.constant 0 : i32
    %c0_i32_0 = arith.constant 0 : i32
    return %c0_i32, %arg0 : i32, i32
  }
  func.func @transform_1(%arg0: i32) -> (i32, i32) {
    %c0_i32 = arith.constant 0 : i32
    %c0_i32_0 = arith.constant 0 : i32
    %c0_i32_1 = arith.constant 0 : i32
    return %c0_i32, %c0_i32_0 : i32, i32
  }
  func.func @transform_2(%arg0: i32) -> (i32, i32) {
    %c0_i32 = arith.constant 0 : i32
    %c0_i32_0 = arith.constant 0 : i32
    %c0_i32_1 = arith.constant 0 : i32
    return %c0_i32, %c0_i32_0 : i32, i32
  }
  func.func @transform_3(%arg0: i32) -> (i32, i32) {
    %c0_i32 = arith.constant 0 : i32
    %c0_i32_0 = arith.constant 0 : i32
    %c0_i32_1 = arith.constant 0 : i32
    return %c0_i32, %c0_i32_0 : i32, i32
  }
  func.func @transform_4(%arg0: i32) -> (i32, i32) {
    %c0_i32 = arith.constant 0 : i32
    %c0_i32_0 = arith.constant 0 : i32
    %c0_i32_1 = arith.constant 0 : i32
    return %c0_i32, %c0_i32_0 : i32, i32
  }
  func.func @transform_5(%arg0: i32) -> (i32, i32) {
    %c0_i32 = arith.constant 0 : i32
    %c0_i32_0 = arith.constant 0 : i32
    %c0_i32_1 = arith.constant 0 : i32
    return %c0_i32, %c0_i32_0 : i32, i32
  }
  func.func @transform_6(%arg0: i32) -> (i32, i32) {
    %c0_i32 = arith.constant 0 : i32
    %c0_i32_0 = arith.constant 0 : i32
    %c0_i32_1 = arith.constant 0 : i32
    return %c0_i32, %c0_i32_0 : i32, i32
  }
  func.func @transform_7(%arg0: i32) -> (i32, i32) {
    %c0_i32 = arith.constant 0 : i32
    %c0_i32_0 = arith.constant 0 : i32
    return %c0_i32, %arg0 : i32, i32
  }
}

</mosaic_0001>

<llo_original>
// kernel: simple_mlp_forward.1
$region0: #{simple_mlp_forward.1}
  #allocation0 [shape = 'u32[]', space=smem, size = 0x4, offset = 0x4, fixed_abs, tag = 'smem constant byte address 0x4 - core index']
  #allocation1 [shape = 'u32[144,128]{1,0:T(1,128)}', space=vmem, size = 0x12000, scoped, tag = 'internal scratch']
  #allocation2 [shape = 'f32[1,1]{1,0:T(1,128)S(6)}', space=smem, size = 0x200, scoped, tag = 'scoped memory for simple_mlp_forward.1']
  %s0 = inlined_call_operand.vmem [shape: f32[16,128], index: 0, kind: input, shape index: {}]
  %s1 = inlined_call_operand.vmem [shape: f32[32,16], index: 1, kind: input, shape index: {}]
  %s2 = inlined_call_operand.vmem [shape: f32[32,1], index: 2, kind: input, shape index: {}]
  %s3 = inlined_call_operand.vmem [shape: f32[32,32], index: 3, kind: input, shape index: {}]
  %s4 = inlined_call_operand.vmem [shape: f32[32,1], index: 4, kind: input, shape index: {}]
  %s5 = inlined_call_operand.vmem [shape: f32[32,1], index: 5, kind: input, shape index: {}]
  %s6 = inlined_call_operand.<no memory space> [shape: f32[1,1], index: 6, kind: input, shape index: {}]
  %s7 = inlined_call_operand.vmem [shape: f32[1,128], index: 7, kind: output, shape index: {}]
  %s8 = sld [smem:[#allocation0]]
  $region38: #{simple_mlp_forward.1} parent=0
    _
  %s10 = ssub.s32 1, %s8
  %s11 = scalar_select 0, %s10, %s8
  %12 = sst [smem:[#allocation2]] %s6
  // Predicated region
  $region2: #{simple_mlp_forward.1} parent=0 // pred_check
    _
  $region3: #{simple_mlp_forward.1} parent=0 // pred_check_branch
    %14 = sbr.rel (0) target = $region5
  $region4: #{simple_mlp_forward.1} parent=0 // pred_region
    _
  $region5: #{simple_mlp_forward.1} parent=0 // pred_fallthru
    _
  // Predicated region
  $region6: #{simple_mlp_forward.1} parent=0 // pred_check
    _
  $region7: #{simple_mlp_forward.1} parent=0 // pred_check_branch
    %16 = sbr.rel (0) target = $region9
  $region8: #{simple_mlp_forward.1} parent=0 // pred_region
    _
  $region9: #{simple_mlp_forward.1} parent=0 // pred_fallthru
    _
  // Predicated region
  $region10: #{simple_mlp_forward.1} parent=0 // pred_check
    _
  $region11: #{simple_mlp_forward.1} parent=0 // pred_check_branch
    %18 = sbr.rel (0) target = $region13
  $region12: #{simple_mlp_forward.1} parent=0 // pred_region
    _
  $region13: #{simple_mlp_forward.1} parent=0 // pred_fallthru
    _
  // Predicated region
  $region14: #{simple_mlp_forward.1} parent=0 // pred_check
    _
  $region15: #{simple_mlp_forward.1} parent=0 // pred_check_branch
    %20 = sbr.rel (0) target = $region17
  $region16: #{simple_mlp_forward.1} parent=0 // pred_region
    _
  $region17: #{simple_mlp_forward.1} parent=0 // pred_fallthru
    _
  // Predicated region
  $region18: #{simple_mlp_forward.1} parent=0 // pred_check
    _
  $region19: #{simple_mlp_forward.1} parent=0 // pred_check_branch
    %22 = sbr.rel (0) target = $region21
  $region20: #{simple_mlp_forward.1} parent=0 // pred_region
    _
  $region21: #{simple_mlp_forward.1} parent=0 // pred_fallthru
    _
  // Predicated region
  $region22: #{simple_mlp_forward.1} parent=0 // pred_check
    _
  $region23: #{simple_mlp_forward.1} parent=0 // pred_check_branch
    %24 = sbr.rel (0) target = $region25
  $region24: #{simple_mlp_forward.1} parent=0 // pred_region
    _
  $region25: #{simple_mlp_forward.1} parent=0 // pred_fallthru
    _
  // Predicated region
  $region26: #{simple_mlp_forward.1} parent=0 // pred_check
    _
  $region27: #{simple_mlp_forward.1} parent=0 // pred_check_branch
    %26 = sbr.rel (0) target = $region29
  $region28: #{simple_mlp_forward.1} parent=0 // pred_region
    _
  $region29: #{simple_mlp_forward.1} parent=0 // pred_fallthru
    _
  %v27 = vld [vmem:[%s0] sm:$0xff]
  %v28 = vld [vmem:[%s0 + $0x8] sm:$0xff]
  %v29 = vld [vmem:[%s1] sm:$0xff]
  %v30 = vld [vmem:[%s1 + $0x8] sm:$0xff]
  %v31 = vld [vmem:[%s1 + $0x10] sm:$0xff]
  %v32 = vld [vmem:[%s1 + $0x18] sm:$0xff]
  %v33 = vld [vmem:[%s2] sm:$0xff]
  %v34 = vld [vmem:[%s2 + $0x8] sm:$0xff]
  %v35 = vld [vmem:[%s2 + $0x10] sm:$0xff]
  %v36 = vld [vmem:[%s2 + $0x18] sm:$0xff]
  %38 = vset.pattern.permute.xlu0 0
  %39 = vperm.xlu0 %38, %v33
  %v40 = vpop.permute.xlu0 %39
  %43 = vset.pattern.permute.xlu0 0
  %44 = vperm.xlu0 %43, %v34
  %v45 = vpop.permute.xlu0 %44
  %48 = vset.pattern.permute.xlu0 0
  %49 = vperm.xlu0 %48, %v35
  %v50 = vpop.permute.xlu0 %49
  %53 = vset.pattern.permute.xlu0 0
  %54 = vperm.xlu0 %53, %v36
  %v55 = vpop.permute.xlu0 %54
  %vm57 = vcmask 130048
  %v59 = vsel %vm57, %v29, 0
  %v62 = vsel %vm57, %v30, 0
  %v65 = vsel %vm57, %v31, 0
  %v68 = vsel %vm57, %v32, 0
  %70 = vmatprep.subr.mxu0 0.0
  %71 = vmatpush1.msra.mxu0 0.0
  %72 = vmatprep.subr.mxu0 0.0
  %73 = vmatpush1.msra.mxu0 0.0
  %74 = vmatprep.subr.mxu0 0.0
  %75 = vmatpush1.msra.mxu0 0.0
  %76 = vmatprep.subr.mxu0 0.0
  %77 = vmatpush1.msra.mxu0 0.0
  %78 = vmatprep.subr.mxu0 0.0
  %79 = vmatpush1.msra.mxu0 0.0
  %80 = vmatprep.subr.mxu0 0.0
  %81 = vmatpush1.msra.mxu0 0.0
  %82 = vmatprep.subr.mxu0 0.0
  %83 = vmatpush1.msra.mxu0 0.0
  %84 = vmatprep.subr.mxu0 0.0
  %85 = vmatpush1.msra.mxu0 0.0
  %86 = vmatprep.subr.mxu0 0.0
  %87 = vmatpush1.msra.mxu0 0.0
  %88 = vmatprep.subr.mxu0 0.0
  %89 = vmatpush1.msra.mxu0 0.0
  %90 = vmatprep.subr.mxu0 0.0
  %91 = vmatpush1.msra.mxu0 0.0
  %92 = vmatprep.subr.mxu0 0.0
  %93 = vmatpush1.msra.mxu0 0.0
  %94 = vmatprep.subr.mxu0 0.0
  %95 = vmatpush1.msra.mxu0 0.0
  %96 = vmatprep.subr.mxu0 0.0
  %97 = vmatpush1.msra.mxu0 0.0
  %98 = vmatprep.subr.mxu0 0.0
  %99 = vmatpush1.msra.mxu0 %v28
  %100 = vmatprep.subr.mxu0 0.0
  %101 = vmatpush1.msra.mxu0 %v27
  %102 = vmatprep.subr.mxu0 0.0
  %103 = vmatpush2.msra.mxu0 0.0
  %104 = vmatprep.subr.mxu0 0.0
  %105 = vmatpush2.msra.mxu0 0.0
  %106 = vmatprep.subr.mxu0 0.0
  %107 = vmatpush2.msra.mxu0 0.0
  %108 = vmatprep.subr.mxu0 0.0
  %109 = vmatpush2.msra.mxu0 0.0
  %110 = vmatprep.subr.mxu0 0.0
  %111 = vmatpush2.msra.mxu0 0.0
  %112 = vmatprep.subr.mxu0 0.0
  %113 = vmatpush2.msra.mxu0 0.0
  %114 = vmatprep.subr.mxu0 0.0
  %115 = vmatpush2.msra.mxu0 0.0
  %116 = vmatprep.subr.mxu0 0.0
  %117 = vmatpush2.msra.mxu0 0.0
  %118 = vmatprep.subr.mxu0 0.0
  %119 = vmatpush2.msra.mxu0 0.0
  %120 = vmatprep.subr.mxu0 0.0
  %121 = vmatpush2.msra.mxu0 0.0
  %122 = vmatprep.subr.mxu0 0.0
  %123 = vmatpush2.msra.mxu0 0.0
  %124 = vmatprep.subr.mxu0 0.0
  %125 = vmatpush2.msra.mxu0 0.0
  %126 = vmatprep.subr.mxu0 0.0
  %127 = vmatpush2.msra.mxu0 0.0
  %128 = vmatprep.subr.mxu0 0.0
  %129 = vmatpush2.msra.mxu0 0.0
  %130 = vmatprep.subr.mxu0 0.0
  %131 = vmatpush2.msra.mxu0 0.0
  %132 = vmatprep.subr.mxu0 0.0
  %133 = vmatpush2.msra.mxu0 0.0
  %134 = vmatprep.mubr.f32.mxu0 0.0
  %135 = vmatmul.mubr.f32.gmra.mxu0 %v59
  %v136 = vpop.f32.mrf.mxu0
  %v137 = vadd.f32 %v40, %v136
  %v138 = vpop.f32.mrf.mxu0
  %139 = vmatprep.mubr.f32.mxu0 0.0
  %140 = vmatmul.mubr.f32.gmra.mxu0 %v62
  %v141 = vpop.f32.mrf.mxu0
  %v142 = vadd.f32 %v45, %v141
  %v143 = vpop.f32.mrf.mxu0
  %144 = vmatprep.mubr.f32.mxu0 0.0
  %145 = vmatmul.mubr.f32.gmra.mxu0 %v65
  %v146 = vpop.f32.mrf.mxu0
  %v147 = vadd.f32 %v50, %v146
  %v148 = vpop.f32.mrf.mxu0
  %149 = vmatprep.mubr.f32.mxu0 0.0
  %150 = vmatmul.mubr.f32.gmra.mxu0 %v68
  %v151 = vpop.f32.mrf.mxu0
  %v152 = vadd.f32 %v55, %v151
  %v153 = vpop.f32.mrf.mxu0
  %154 = vdwg.mxu0
  %v155 = vmax.f32 %v137, 0.0
  %v156 = vmax.f32 %v142, 0.0
  %v157 = vmax.f32 %v147, 0.0
  %v158 = vmax.f32 %v152, 0.0
  %v159 = vld [vmem:[%s3] sm:$0xff]
  %v160 = vld [vmem:[%s3 + $0x8] sm:$0xff]
  %v161 = vld [vmem:[%s3 + $0x10] sm:$0xff]
  %v162 = vld [vmem:[%s3 + $0x18] sm:$0xff]
  %v163 = vld [vmem:[%s4] sm:$0xff]
  %v164 = vld [vmem:[%s4 + $0x8] sm:$0xff]
  %v165 = vld [vmem:[%s4 + $0x10] sm:$0xff]
  %v166 = vld [vmem:[%s4 + $0x18] sm:$0xff]
  %168 = vset.pattern.permute.xlu0 0
  %169 = vperm.xlu0 %168, %v163
  %v170 = vpop.permute.xlu0 %169
  %173 = vset.pattern.permute.xlu0 0
  %174 = vperm.xlu0 %173, %v164
  %v175 = vpop.permute.xlu0 %174
  %178 = vset.pattern.permute.xlu0 0
  %179 = vperm.xlu0 %178, %v165
  %v180 = vpop.permute.xlu0 %179
  %183 = vset.pattern.permute.xlu0 0
  %184 = vperm.xlu0 %183, %v166
  %v185 = vpop.permute.xlu0 %184
  %vm187 = vcmask 261120
  %v189 = vsel %vm187, %v159, 0
  %v192 = vsel %vm187, %v160, 0
  %v195 = vsel %vm187, %v161, 0
  %v198 = vsel %vm187, %v162, 0
  %200 = vmatprep.subr.mxu0 0.0
  %201 = vmatpush1.msra.mxu0 0.0
  %202 = vmatprep.subr.mxu0 0.0
  %203 = vmatpush1.msra.mxu0 0.0
  %204 = vmatprep.subr.mxu0 0.0
  %205 = vmatpush1.msra.mxu0 0.0
  %206 = vmatprep.subr.mxu0 0.0
  %207 = vmatpush1.msra.mxu0 0.0
  %208 = vmatprep.subr.mxu0 0.0
  %209 = vmatpush1.msra.mxu0 0.0
  %210 = vmatprep.subr.mxu0 0.0
  %211 = vmatpush1.msra.mxu0 0.0
  %212 = vmatprep.subr.mxu0 0.0
  %213 = vmatpush1.msra.mxu0 0.0
  %214 = vmatprep.subr.mxu0 0.0
  %215 = vmatpush1.msra.mxu0 0.0
  %216 = vmatprep.subr.mxu0 0.0
  %217 = vmatpush1.msra.mxu0 0.0
  %218 = vmatprep.subr.mxu0 0.0
  %219 = vmatpush1.msra.mxu0 0.0
  %220 = vmatprep.subr.mxu0 0.0
  %221 = vmatpush1.msra.mxu0 0.0
  %222 = vmatprep.subr.mxu0 0.0
  %223 = vmatpush1.msra.mxu0 0.0
  %224 = vmatprep.subr.mxu0 0.0
  %225 = vmatpush1.msra.mxu0 %v158
  %226 = vmatprep.subr.mxu0 0.0
  %227 = vmatpush1.msra.mxu0 %v157
  %228 = vmatprep.subr.mxu0 0.0
  %229 = vmatpush1.msra.mxu0 %v156
  %230 = vmatprep.subr.mxu0 0.0
  %231 = vmatpush1.msra.mxu0 %v155
  %232 = vmatprep.subr.mxu0 0.0
  %233 = vmatpush2.msra.mxu0 0.0
  %234 = vmatprep.subr.mxu0 0.0
  %235 = vmatpush2.msra.mxu0 0.0
  %236 = vmatprep.subr.mxu0 0.0
  %237 = vmatpush2.msra.mxu0 0.0
  %238 = vmatprep.subr.mxu0 0.0
  %239 = vmatpush2.msra.mxu0 0.0
  %240 = vmatprep.subr.mxu0 0.0
  %241 = vmatpush2.msra.mxu0 0.0
  %242 = vmatprep.subr.mxu0 0.0
  %243 = vmatpush2.msra.mxu0 0.0
  %244 = vmatprep.subr.mxu0 0.0
  %245 = vmatpush2.msra.mxu0 0.0
  %246 = vmatprep.subr.mxu0 0.0
  %247 = vmatpush2.msra.mxu0 0.0
  %248 = vmatprep.subr.mxu0 0.0
  %249 = vmatpush2.msra.mxu0 0.0
  %250 = vmatprep.subr.mxu0 0.0
  %251 = vmatpush2.msra.mxu0 0.0
  %252 = vmatprep.subr.mxu0 0.0
  %253 = vmatpush2.msra.mxu0 0.0
  %254 = vmatprep.subr.mxu0 0.0
  %255 = vmatpush2.msra.mxu0 0.0
  %256 = vmatprep.subr.mxu0 0.0
  %257 = vmatpush2.msra.mxu0 0.0
  %258 = vmatprep.subr.mxu0 0.0
  %259 = vmatpush2.msra.mxu0 0.0
  %260 = vmatprep.subr.mxu0 0.0
  %261 = vmatpush2.msra.mxu0 0.0
  %262 = vmatprep.subr.mxu0 0.0
  %263 = vmatpush2.msra.mxu0 0.0
  %264 = vmatprep.mubr.f32.mxu0 0.0
  %265 = vmatmul.mubr.f32.gmra.mxu0 %v189
  %v266 = vpop.f32.mrf.mxu0
  %v267 = vadd.f32 %v170, %v266
  %v268 = vpop.f32.mrf.mxu0
  %269 = vmatprep.mubr.f32.mxu0 0.0
  %270 = vmatmul.mubr.f32.gmra.mxu0 %v192
  %v271 = vpop.f32.mrf.mxu0
  %v272 = vadd.f32 %v175, %v271
  %v273 = vpop.f32.mrf.mxu0
  %274 = vmatprep.mubr.f32.mxu0 0.0
  %275 = vmatmul.mubr.f32.gmra.mxu0 %v195
  %v276 = vpop.f32.mrf.mxu0
  %v277 = vadd.f32 %v180, %v276
  %v278 = vpop.f32.mrf.mxu0
  %279 = vmatprep.mubr.f32.mxu0 0.0
  %280 = vmatmul.mubr.f32.gmra.mxu0 %v198
  %v281 = vpop.f32.mrf.mxu0
  %v282 = vadd.f32 %v185, %v281
  %v283 = vpop.f32.mrf.mxu0
  %284 = vdwg.mxu0
  %v285 = vmax.f32 %v267, 0.0
  %v286 = vmax.f32 %v272, 0.0
  %v287 = vmax.f32 %v277, 0.0
  %v288 = vmax.f32 %v282, 0.0
  %v289 = vld [vmem:[%s5] sm:$0xff]
  %v290 = vld [vmem:[%s5 + $0x8] sm:$0xff]
  %v291 = vld [vmem:[%s5 + $0x10] sm:$0xff]
  %v292 = vld [vmem:[%s5 + $0x18] sm:$0xff]
  %294 = vset.pattern.permute.xlu0 0
  %295 = vperm.xlu0 %294, %v289
  %v296 = vpop.permute.xlu0 %295
  %299 = vset.pattern.permute.xlu0 0
  %300 = vperm.xlu0 %299, %v290
  %v301 = vpop.permute.xlu0 %300
  %304 = vset.pattern.permute.xlu0 0
  %305 = vperm.xlu0 %304, %v291
  %v306 = vpop.permute.xlu0 %305
  %309 = vset.pattern.permute.xlu0 0
  %310 = vperm.xlu0 %309, %v292
  %v311 = vpop.permute.xlu0 %310
  %v313 = vmul.f32 %v296, %v285
  %v314 = vmul.f32 %v301, %v286
  %v315 = vmul.f32 %v306, %v287
  %v316 = vmul.f32 %v311, %v288
  %v317 = vadd.f32 %v313, %v314
  %v318 = vadd.f32 %v317, %v315
  %v319 = vadd.f32 %v318, %v316
  %v320 = vrot.slane %v319, 4
  %v321 = vadd.f32 %v319, %v320
  %v322 = vrot.slane %v321, 2
  %v323 = vadd.f32 %v321, %v322
  %v324 = vrot.slane %v323, 1
  %v325 = vadd.f32 %v323, %v324
  %s326 = sld [smem:[#allocation2]]
  %v327 = vstv %s326
  %v328 = vadd.f32 %v325, %v327
  %v329 = vxor.u32 %v328, 2147483648
  %v330 = vmul.f32 %v329, 1.442695
  %v331 = vpow.pop %v330
  %v332 = vadd.f32 %v331, 1.0
  %v333 = vrcp.pop %v332
  %v334 = vmul.f32 1.0, %v333
  %335 = vst [vmem:[%s7] sm:$0x1] %v334
  // Predicated region
  $region30: #{simple_mlp_forward.1} parent=0 // pred_check
    _
  $region31: #{simple_mlp_forward.1} parent=0 // pred_check_branch
    %337 = sbr.rel (0) target = $region33
  $region32: #{simple_mlp_forward.1} parent=0 // pred_region
    _
  $region33: #{simple_mlp_forward.1} parent=0 // pred_fallthru
    _
  // Predicated region
  $region34: #{simple_mlp_forward.1} parent=0 // pred_check
    _
  $region35: #{simple_mlp_forward.1} parent=0 // pred_check_branch
    %339 = sbr.rel (0) target = $region37
  $region36: #{simple_mlp_forward.1} parent=0 // pred_region
    _
  $region37: #{simple_mlp_forward.1} parent=0 // pred_fallthru
    _

</llo_original>
